<compile_context>
chip_gen: v6e
topology: v6e:2x2x1
jax: 0.10.0
libtpu: 0.0.40
codegen_flags: <defaults>
</compile_context>

<pallas_src>
import functools

import jax
import jax.numpy as jnp
from jax import lax
from jax.experimental import pallas as pl
from jax.experimental.pallas import tpu as pltpu

HIDDEN = 128   # hidden width of the PyTorch module
SUBLANE = 8


def _round_up(x, m):
    return ((x + m - 1) // m) * m


# ---------------------------------------------------------------------------
# Kernels
# ---------------------------------------------------------------------------

def _mlp_logits(x_ref, w1_ref, b1_ref, w2_ref, b2_ref, w3_ref, b3_ref):
    """Shared body: 3 MXU matmuls (bf16 operands, f32 acc) + f32 bias/ReLU."""
    x = x_ref[...].astype(jnp.bfloat16)                          # (tb, in_dim)
    h1 = jnp.dot(x, w1_ref[...], preferred_element_type=jnp.float32)
    h1 = jnp.maximum(h1 + b1_ref[...], 0.0)
    h2 = jnp.dot(h1.astype(jnp.bfloat16), w2_ref[...],
                 preferred_element_type=jnp.float32)
    h2 = jnp.maximum(h2 + b2_ref[...], 0.0)
    return jnp.dot(h2.astype(jnp.bfloat16), w3_ref[...],
                   preferred_element_type=jnp.float32) + b3_ref[...]


def _continuous_kernel(x_ref, w1_ref, b1_ref, w2_ref, b2_ref, w3_ref, b3_ref,
                       o_ref):
    o_ref[...] = _mlp_logits(x_ref, w1_ref, b1_ref, w2_ref, b2_ref,
                             w3_ref, b3_ref)


def _discrete_single_kernel(x_ref, w1_ref, b1_ref, w2_ref, b2_ref, w3_ref,
                            b3_ref, o_ref):
    """Whole batch in one block: exact softmax over dim=0 (the batch axis)."""
    logits = _mlp_logits(x_ref, w1_ref, b1_ref, w2_ref, b2_ref, w3_ref, b3_ref)
    m = jnp.max(logits, axis=0, keepdims=True)
    e = jnp.exp(logits - m)
    o_ref[...] = e / jnp.sum(e, axis=0, keepdims=True)


def _discrete_tiled_kernel(batch, tile,
                           x_ref, w1_ref, b1_ref, w2_ref, b2_ref, w3_ref,
                           b3_ref, logits_ref, m_ref, s_ref):
    """Pass 1 of the large-batch discrete path.

    Emits raw logits (tiled over batch) and maintains resident running
    max / sum-of-exp accumulators over the batch axis (online softmax).
    Padded batch rows are masked to -inf before the axis-0 reduction.
    """
    i = pl.program_id(0)
    logits = _mlp_logits(x_ref, w1_ref, b1_ref, w2_ref, b2_ref, w3_ref, b3_ref)
    logits_ref[...] = logits

    row = i * tile + lax.broadcasted_iota(jnp.int32, logits.shape, 0)
    masked = jnp.where(row < batch, logits, -jnp.inf)

    @pl.when(i == 0)
    def _():
        m_ref[...] = jnp.full_like(m_ref, -jnp.inf)
        s_ref[...] = jnp.zeros_like(s_ref)

    m_old = m_ref[...]
    m_new = jnp.maximum(m_old, jnp.max(masked, axis=0, keepdims=True))
    s_ref[...] = (s_ref[...] * jnp.exp(m_old - m_new)
                  + jnp.sum(jnp.exp(masked - m_new), axis=0, keepdims=True))
    m_ref[...] = m_new


def _softmax_finalize_kernel(logits_ref, m_ref, s_ref, o_ref):
    """Pass 2: exact normalization with the final max / denominator."""
    o_ref[...] = jnp.exp(logits_ref[...] - m_ref[...]) / s_ref[...]


# ---------------------------------------------------------------------------
# Parameters
# ---------------------------------------------------------------------------

def init_params(key, in_dim, out_dim):
    """Raw f32 parameters matching PyTorch nn.Linear default init, transposed
    to (in_features, out_features) so the kernel computes x @ W + b."""
    ks = jax.random.split(key, 6)

    def uni(k, shape, fan_in):
        bound = 1.0 / jnp.sqrt(jnp.float32(fan_in))
        return jax.random.uniform(k, shape, jnp.float32, -bound, bound)

    return {
        "w1": uni(ks[0], (in_dim, HIDDEN), in_dim),
        "b1": uni(ks[1], (1, HIDDEN), in_dim),
        "w2": uni(ks[2], (HIDDEN, HIDDEN), HIDDEN),
        "b2": uni(ks[3], (1, HIDDEN), HIDDEN),
        "w3": uni(ks[4], (HIDDEN, out_dim), HIDDEN),
        "b3": uni(ks[5], (1, out_dim), HIDDEN),
    }


def pack_params(params):
    """One-time prep: cast MXU operands (weights) to bf16. No lane padding."""
    return {
        "w1": params["w1"].astype(jnp.bfloat16),
        "b1": params["b1"].astype(jnp.float32),
        "w2": params["w2"].astype(jnp.bfloat16),
        "b2": params["b2"].astype(jnp.float32),
        "w3": params["w3"].astype(jnp.bfloat16),
        "b3": params["b3"].astype(jnp.float32),
        "in_dim": int(params["w1"].shape[0]),
        "out_dim": int(params["w3"].shape[1]),
    }


# ---------------------------------------------------------------------------
# Wrapper
# ---------------------------------------------------------------------------

def feedforward_actor(obs, packed, is_discrete, *, batch_tile=1024):
    """obs: (B, in_dim) float. Returns (B, out_dim) f32."""
    B, in_dim = obs.shape
    assert in_dim == packed["in_dim"]
    out_dim = packed["out_dim"]

    if obs.dtype != jnp.float32:
        obs = obs.astype(jnp.float32)

    w1, b1 = packed["w1"], packed["b1"]
    w2, b2 = packed["w2"], packed["b2"]
    w3, b3 = packed["w3"], packed["b3"]
    weight_args = (w1, b1, w2, b2, w3, b3)

    # Weights/biases: constant block index across the grid -> DMA'd once,
    # VMEM-resident for every batch block.
    wspecs = [
        pl.BlockSpec((in_dim, HIDDEN), lambda i: (0, 0)),
        pl.BlockSpec((1, HIDDEN), lambda i: (0, 0)),
        pl.BlockSpec((HIDDEN, HIDDEN), lambda i: (0, 0)),
        pl.BlockSpec((1, HIDDEN), lambda i: (0, 0)),
        pl.BlockSpec((HIDDEN, out_dim), lambda i: (0, 0)),
        pl.BlockSpec((1, out_dim), lambda i: (0, 0)),
    ]

    num_blocks = pl.cdiv(B, batch_tile)

    if is_discrete:
        if num_blocks == 1:
            # Small batch: one block, no padding, exact softmax over dim=0.
            return pl.pallas_call(
                _discrete_single_kernel,
                out_shape=jax.ShapeDtypeStruct((B, out_dim), jnp.float32),
                grid=(1,),
                in_specs=[pl.BlockSpec((B, in_dim), lambda i: (0, 0))] + wspecs,
                out_specs=pl.BlockSpec((B, out_dim), lambda i: (0, 0)),
                compiler_params=pltpu.CompilerParams(
                    dimension_semantics=("arbitrary",)),
            )(obs, *weight_args)

        # Large batch: exact two-pass online softmax tiled over the batch axis
        # (bounded VMEM working set, important on v7x's 64 MiB VMEM).
        tb = _round_up(pl.cdiv(B, num_blocks), SUBLANE)
        b_p = tb * num_blocks
        x = obs if b_p == B else jnp.pad(obs, ((0, b_p - B), (0, 0)))
        kernel = functools.partial(_discrete_tiled_kernel, B, tb)
        logits, m, s = pl.pallas_call(
            kernel,
            out_shape=(jax.ShapeDtypeStruct((b_p, out_dim), jnp.float32),
                       jax.ShapeDtypeStruct((1, out_dim), jnp.float32),
                       jax.ShapeDtypeStruct((1, out_dim), jnp.float32)),
            grid=(num_blocks,),
            in_specs=[pl.BlockSpec((tb, in_dim), lambda i: (i, 0))] + wspecs,
            out_specs=(pl.BlockSpec((tb, out_dim), lambda i: (i, 0)),
                       pl.BlockSpec((1, out_dim), lambda i: (0, 0)),
                       pl.BlockSpec((1, out_dim), lambda i: (0, 0))),
            compiler_params=pltpu.CompilerParams(
                dimension_semantics=("arbitrary",)),
        )(x, *weight_args)

        probs = pl.pallas_call(
            _softmax_finalize_kernel,
            out_shape=jax.ShapeDtypeStruct((b_p, out_dim), jnp.float32),
            grid=(num_blocks,),
            in_specs=[pl.BlockSpec((tb, out_dim), lambda i: (i, 0)),
                      pl.BlockSpec((1, out_dim), lambda i: (0, 0)),
                      pl.BlockSpec((1, out_dim), lambda i: (0, 0))],
            out_specs=pl.BlockSpec((tb, out_dim), lambda i: (i, 0)),
            compiler_params=pltpu.CompilerParams(
                dimension_semantics=("parallel",)),
        )(logits, m, s)
        return probs[:B] if b_p != B else probs

    # ---------------- continuous path ----------------
    if num_blocks == 1 and B >= 2 * SUBLANE:
        num_blocks = 2          # v7x: give each TensorCore a block
    if num_blocks == 1:
        tb, b_p = B, B          # tiny batch: full-extent block, no padding
    else:
        tb = _round_up(pl.cdiv(B, num_blocks), SUBLANE)
        b_p = tb * num_blocks
    x = obs if b_p == B else jnp.pad(obs, ((0, b_p - B), (0, 0)))

    out = pl.pallas_call(
        _continuous_kernel,
        out_shape=jax.ShapeDtypeStruct((b_p, out_dim), jnp.float32),
        grid=(num_blocks,),
        in_specs=[pl.BlockSpec((tb, in_dim), lambda i: (i, 0))] + wspecs,
        out_specs=pl.BlockSpec((tb, out_dim), lambda i: (i, 0)),
        compiler_params=pltpu.CompilerParams(
            dimension_semantics=("parallel",)),
    )(x, *weight_args)
    return out[:B] if b_p != B else out


# ---------------------------------------------------------------------------
# Reference + test
# ---------------------------------------------------------------------------

def _reference(obs, p, is_discrete):
    h1 = jnp.maximum(obs @ p["w1"] + p["b1"], 0.0)
    h2 = jnp.maximum(h1 @ p["w2"] + p["b2"], 0.0)
    logits = h2 @ p["w3"] + p["b3"]
    if is_discrete:
        return jax.nn.softmax(logits, axis=0)
    return logits


if __name__ == "__main__":
    key = jax.random.PRNGKey(0)
    k_obs, k_obs2, k_par = jax.random.split(key, 3)

    in_dim, out_dim = 16, 8
    raw = init_params(k_par, in_dim, out_dim)
    packed = pack_params(raw)   # bf16 cast once, reuse across calls

    # Small batch (matches typical actor usage): single-block paths.
    obs_small = jax.random.normal(k_obs, (2, in_dim), jnp.float32)
    for is_discrete in (True, False):
        out = jax.block_until_ready(
            feedforward_actor(obs_small, packed, is_discrete))
        ref = _reference(obs_small, raw, is_discrete)
        assert out.shape == (2, out_dim)
        assert jnp.allclose(out, ref, atol=2e-2, rtol=2e-2), (
            f"mismatch at B=2 (is_discrete={is_discrete})")

    # Ragged batch with a small tile: exercises the multi-block parallel grid
    # (continuous) and the tiled online-softmax + finalize path (discrete),
    # including batch padding + -inf masking.
    obs_big = jax.random.normal(k_obs2, (50, in_dim), jnp.float32)
    for is_discrete in (True, False):
        out = jax.block_until_ready(
            feedforward_actor(obs_big, packed, is_discrete, batch_tile=16))
        ref = _reference(obs_big, raw, is_discrete)
        assert out.shape == (50, out_dim)
        assert jnp.allclose(out, ref, atol=2e-2, rtol=2e-2), (
            f"mismatch at B=50 (is_discrete={is_discrete})")

    print("KERNEL_OK")
</pallas_src>

<mosaic_0001>
module attributes {stable_mosaic.version = 11 : i64} {
  func.func @_discrete_single_kernel(%arg0: i32, %arg1: memref<2x16xf32, #tpu.memory_space<vmem>>, %arg2: memref<16x128xbf16, #tpu.memory_space<vmem>>, %arg3: memref<1x128xf32, #tpu.memory_space<vmem>>, %arg4: memref<128x128xbf16, #tpu.memory_space<vmem>>, %arg5: memref<1x128xf32, #tpu.memory_space<vmem>>, %arg6: memref<128x8xbf16, #tpu.memory_space<vmem>>, %arg7: memref<1x8xf32, #tpu.memory_space<vmem>>, %arg8: memref<2x8xf32, #tpu.memory_space<vmem>>) attributes {dimension_semantics = [#tpu.dimension_semantics<arbitrary>], iteration_bounds = array<i64: 1>, scalar_prefetch = 0 : i64, scratch_operands = 0 : i64, tpu.core_type = #tpu.core_type<tc>, window_params = [{pipeline_mode = #tpu.pipeline_mode<synchronous>, transform_indices = @transform_0, window_bounds = array<i64: 2, 16>}, {pipeline_mode = #tpu.pipeline_mode<synchronous>, transform_indices = @transform_1, window_bounds = array<i64: 16, 128>}, {pipeline_mode = #tpu.pipeline_mode<synchronous>, transform_indices = @transform_2, window_bounds = array<i64: 1, 128>}, {pipeline_mode = #tpu.pipeline_mode<synchronous>, transform_indices = @transform_3, window_bounds = array<i64: 128, 128>}, {pipeline_mode = #tpu.pipeline_mode<synchronous>, transform_indices = @transform_4, window_bounds = array<i64: 1, 128>}, {pipeline_mode = #tpu.pipeline_mode<synchronous>, transform_indices = @transform_5, window_bounds = array<i64: 128, 8>}, {pipeline_mode = #tpu.pipeline_mode<synchronous>, transform_indices = @transform_6, window_bounds = array<i64: 1, 8>}, {pipeline_mode = #tpu.pipeline_mode<synchronous>, transform_indices = @transform_7, window_bounds = array<i64: 2, 8>}]} {
    %c0 = arith.constant 0 : index
    %c0_0 = arith.constant 0 : index
    %0 = vector.load %arg1[%c0, %c0_0] : memref<2x16xf32, #tpu.memory_space<vmem>>, vector<2x16xf32>
    %1 = arith.truncf %0 : vector<2x16xf32> to vector<2x16xbf16>
    %c0_1 = arith.constant 0 : index
    %c0_2 = arith.constant 0 : index
    %2 = vector.load %arg2[%c0_1, %c0_2] : memref<16x128xbf16, #tpu.memory_space<vmem>>, vector<16x128xbf16>
    %cst = arith.constant dense<0.000000e+00> : vector<2x128xf32>
    %3 = tpu.matmul %1, %2, %cst {dimension_numbers = #tpu.dot_dimension_numbers<[1], [0], [0], [1], [0, 0, 1, 1], [], []>} : vector<2x16xbf16>, vector<16x128xbf16>, vector<2x128xf32> -> vector<2x128xf32>
    %c0_3 = arith.constant 0 : index
    %c0_4 = arith.constant 0 : index
    %4 = vector.load %arg3[%c0_3, %c0_4] : memref<1x128xf32, #tpu.memory_space<vmem>>, vector<1x128xf32>
    %5 = vector.broadcast %4 : vector<1x128xf32> to vector<2x128xf32>
    %6 = arith.addf %3, %5 : vector<2x128xf32>
    %cst_5 = arith.constant 0.000000e+00 : f32
    %7 = vector.broadcast %cst_5 : f32 to vector<2x128xf32>
    %8 = arith.maximumf %6, %7 : vector<2x128xf32>
    %9 = arith.truncf %8 : vector<2x128xf32> to vector<2x128xbf16>
    %c0_6 = arith.constant 0 : index
    %c0_7 = arith.constant 0 : index
    %10 = vector.load %arg4[%c0_6, %c0_7] : memref<128x128xbf16, #tpu.memory_space<vmem>>, vector<128x128xbf16>
    %cst_8 = arith.constant dense<0.000000e+00> : vector<2x128xf32>
    %11 = tpu.matmul %9, %10, %cst_8 {dimension_numbers = #tpu.dot_dimension_numbers<[1], [0], [0], [1], [0, 0, 1, 1], [], []>} : vector<2x128xbf16>, vector<128x128xbf16>, vector<2x128xf32> -> vector<2x128xf32>
    %c0_9 = arith.constant 0 : index
    %c0_10 = arith.constant 0 : index
    %12 = vector.load %arg5[%c0_9, %c0_10] : memref<1x128xf32, #tpu.memory_space<vmem>>, vector<1x128xf32>
    %13 = vector.broadcast %12 : vector<1x128xf32> to vector<2x128xf32>
    %14 = arith.addf %11, %13 : vector<2x128xf32>
    %cst_11 = arith.constant 0.000000e+00 : f32
    %15 = vector.broadcast %cst_11 : f32 to vector<2x128xf32>
    %16 = arith.maximumf %14, %15 : vector<2x128xf32>
    %17 = arith.truncf %16 : vector<2x128xf32> to vector<2x128xbf16>
    %c0_12 = arith.constant 0 : index
    %c0_13 = arith.constant 0 : index
    %18 = vector.load %arg6[%c0_12, %c0_13] : memref<128x8xbf16, #tpu.memory_space<vmem>>, vector<128x8xbf16>
    %cst_14 = arith.constant dense<0.000000e+00> : vector<2x8xf32>
    %19 = tpu.matmul %17, %18, %cst_14 {dimension_numbers = #tpu.dot_dimension_numbers<[1], [0], [0], [1], [0, 0, 1, 1], [], []>} : vector<2x128xbf16>, vector<128x8xbf16>, vector<2x8xf32> -> vector<2x8xf32>
    %c0_15 = arith.constant 0 : index
    %c0_16 = arith.constant 0 : index
    %20 = vector.load %arg7[%c0_15, %c0_16] : memref<1x8xf32, #tpu.memory_space<vmem>>, vector<1x8xf32>
    %21 = vector.broadcast %20 : vector<1x8xf32> to vector<2x8xf32>
    %22 = arith.addf %19, %21 : vector<2x8xf32>
    %cst_17 = arith.constant dense<0xFF800000> : vector<8xf32>
    %23 = vector.multi_reduction <maximumf>, %22, %cst_17 [0] : vector<2x8xf32> to vector<8xf32>
    %24 = vector.shape_cast %23 : vector<8xf32> to vector<1x8xf32>
    %25 = vector.broadcast %24 : vector<1x8xf32> to vector<2x8xf32>
    %26 = arith.subf %22, %25 : vector<2x8xf32>
    %27 = math.exp %26 : vector<2x8xf32>
    %cst_18 = arith.constant dense<0.000000e+00> : vector<8xf32>
    %28 = vector.multi_reduction <add>, %27, %cst_18 [0] : vector<2x8xf32> to vector<8xf32>
    %29 = vector.shape_cast %28 : vector<8xf32> to vector<1x8xf32>
    %30 = vector.broadcast %29 : vector<1x8xf32> to vector<2x8xf32>
    %31 = arith.divf %27, %30 : vector<2x8xf32>
    %c0_19 = arith.constant 0 : index
    %c0_20 = arith.constant 0 : index
    %32 = vector.load %arg8[%c0_19, %c0_20] : memref<2x8xf32, #tpu.memory_space<vmem>>, vector<2x8xf32>
    tpu.vector_store %arg8[%c0_19, %c0_20], %31 {strides = array<i32>} : memref<2x8xf32, #tpu.memory_space<vmem>>, vector<2x8xf32>,
    return
  }
  func.func @transform_0(%arg0: i32) -> (i32, i32) {
    %c0_i32 = arith.constant 0 : i32
    %c0_i32_0 = arith.constant 0 : i32
    %c0_i32_1 = arith.constant 0 : i32
    return %c0_i32, %c0_i32_0 : i32, i32
  }
  func.func @transform_1(%arg0: i32) -> (i32, i32) {
    %c0_i32 = arith.constant 0 : i32
    %c0_i32_0 = arith.constant 0 : i32
    %c0_i32_1 = arith.constant 0 : i32
    return %c0_i32, %c0_i32_0 : i32, i32
  }
  func.func @transform_2(%arg0: i32) -> (i32, i32) {
    %c0_i32 = arith.constant 0 : i32
    %c0_i32_0 = arith.constant 0 : i32
    %c0_i32_1 = arith.constant 0 : i32
    return %c0_i32, %c0_i32_0 : i32, i32
  }
  func.func @transform_3(%arg0: i32) -> (i32, i32) {
    %c0_i32 = arith.constant 0 : i32
    %c0_i32_0 = arith.constant 0 : i32
    %c0_i32_1 = arith.constant 0 : i32
    return %c0_i32, %c0_i32_0 : i32, i32
  }
  func.func @transform_4(%arg0: i32) -> (i32, i32) {
    %c0_i32 = arith.constant 0 : i32
    %c0_i32_0 = arith.constant 0 : i32
    %c0_i32_1 = arith.constant 0 : i32
    return %c0_i32, %c0_i32_0 : i32, i32
  }
  func.func @transform_5(%arg0: i32) -> (i32, i32) {
    %c0_i32 = arith.constant 0 : i32
    %c0_i32_0 = arith.constant 0 : i32
    %c0_i32_1 = arith.constant 0 : i32
    return %c0_i32, %c0_i32_0 : i32, i32
  }
  func.func @transform_6(%arg0: i32) -> (i32, i32) {
    %c0_i32 = arith.constant 0 : i32
    %c0_i32_0 = arith.constant 0 : i32
    %c0_i32_1 = arith.constant 0 : i32
    return %c0_i32, %c0_i32_0 : i32, i32
  }
  func.func @transform_7(%arg0: i32) -> (i32, i32) {
    %c0_i32 = arith.constant 0 : i32
    %c0_i32_0 = arith.constant 0 : i32
    %c0_i32_1 = arith.constant 0 : i32
    return %c0_i32, %c0_i32_0 : i32, i32
  }
}

</mosaic_0001>

<llo_original>
// kernel: tpu_custom_call.1
$region0: #{tpu_custom_call.1}
  #allocation0 [shape = 'u32[]', space=smem, size = 0x4, offset = 0x4, fixed_abs, tag = 'smem constant byte address 0x4 - core index']
  #allocation1 [shape = 'u32[144,128]{1,0:T(1,128)}', space=vmem, size = 0x12000, scoped, tag = 'internal scratch']
  %s0 = inlined_call_operand.hbm [shape: f32[2,16], index: 0, kind: input, shape index: {}]
  %s1 = inlined_call_operand.vmem [shape: bf16[16,128], index: 1, kind: input, shape index: {}]
  %s2 = inlined_call_operand.vmem [shape: f32[1,128], index: 2, kind: input, shape index: {}]
  %s3 = inlined_call_operand.vmem [shape: bf16[128,128], index: 3, kind: input, shape index: {}]
  %s4 = inlined_call_operand.hbm [shape: f32[1,128], index: 4, kind: input, shape index: {}]
  %s5 = inlined_call_operand.vmem [shape: bf16[128,8], index: 5, kind: input, shape index: {}]
  %s6 = inlined_call_operand.vmem [shape: f32[1,8], index: 6, kind: input, shape index: {}]
  %s7 = inlined_call_operand.hbm [shape: f32[2,8], index: 7, kind: output, shape index: {}]
  %s8 = sld [smem:[#allocation0]]
  $region46: #{tpu_custom_call.1} parent=0
    _
  %s10 = ssub.s32 1, %s8
  %s11 = scalar_select 0, %s10, %s8
  $region1: #{tpu_custom_call.1} parent=0
    #allocation2 [shape = 'u8[1024]{0}', space=vmem, size = 0x400, scoped, tag = 'input window, operand 0, single buffered']
    #allocation3 [shape = 's32[1]{0}', space=sflag, size = 0x4, scoped, tag = 'scoped memory for tpu_custom_call.1']
    #allocation4 [shape = 's32[1]{0}', space=sflag, size = 0x4, scoped, tag = 'scoped memory for tpu_custom_call.1']
    #allocation5 [shape = 'u8[512]{0}', space=vmem, size = 0x400, scoped, tag = 'input window, operand 4, single buffered']
    #allocation6 [shape = 's32[1]{0}', space=sflag, size = 0x4, scoped, tag = 'scoped memory for tpu_custom_call.1']
    #allocation7 [shape = 'u8[1024]{0}', space=vmem, size = 0x400, scoped, tag = 'output window, operand 0, single buffered']
    %12 = vsyncpa [#allocation3], 0
    %13 = vsyncpa [#allocation6], 0
    %14 = vsyncpa [#allocation4], 0
    // Predicated region
    $region2: #{tpu_custom_call.1} parent=1 // pred_check
      _
    $region3: #{tpu_custom_call.1} parent=1 // pred_check_branch
      %16 = sbr.rel (0) target = $region5
    $region4: #{tpu_custom_call.1} parent=1 // pred_region
      %s18 = ssub.s32 32, 32
      %19 = vsyncadd [#allocation3], %s18
      %s21 = sshll.u32 [#allocation2], 4
      %s22 = int_to_ptr.vmem [resolvable:$true] %s21
      %24 = dma.hbm_to_vmem [thread:$0]  %s0, 32, %s22, [#allocation3]
    $region5: #{tpu_custom_call.1} parent=1 // pred_fallthru
      _
    // Predicated region
    $region6: #{tpu_custom_call.1} parent=1 // pred_check
      _
    $region7: #{tpu_custom_call.1} parent=1 // pred_check_branch
      %26 = sbr.rel (0) target = $region9
    $region8: #{tpu_custom_call.1} parent=1 // pred_region
      _
    $region9: #{tpu_custom_call.1} parent=1 // pred_fallthru
      _
    // Predicated region
    $region10: #{tpu_custom_call.1} parent=1 // pred_check
      _
    $region11: #{tpu_custom_call.1} parent=1 // pred_check_branch
      %28 = sbr.rel (0) target = $region13
    $region12: #{tpu_custom_call.1} parent=1 // pred_region
      _
    $region13: #{tpu_custom_call.1} parent=1 // pred_fallthru
      _
    // Predicated region
    $region14: #{tpu_custom_call.1} parent=1 // pred_check
      _
    $region15: #{tpu_custom_call.1} parent=1 // pred_check_branch
      %30 = sbr.rel (0) target = $region17
    $region16: #{tpu_custom_call.1} parent=1 // pred_region
      _
    $region17: #{tpu_custom_call.1} parent=1 // pred_fallthru
      _
    // Predicated region
    $region18: #{tpu_custom_call.1} parent=1 // pred_check
      _
    $region19: #{tpu_custom_call.1} parent=1 // pred_check_branch
      %32 = sbr.rel (0) target = $region21
    $region20: #{tpu_custom_call.1} parent=1 // pred_region
      %s34 = ssub.s32 16, 16
      %35 = vsyncadd [#allocation6], %s34
      %s37 = sshll.u32 [#allocation5], 4
      %s38 = int_to_ptr.vmem [resolvable:$true] %s37
      %40 = dma.hbm_to_vmem [thread:$0]  %s4, 16, %s38, [#allocation6]
    $region21: #{tpu_custom_call.1} parent=1 // pred_fallthru
      _
    // Predicated region
    $region22: #{tpu_custom_call.1} parent=1 // pred_check
      _
    $region23: #{tpu_custom_call.1} parent=1 // pred_check_branch
      %42 = sbr.rel (0) target = $region25
    $region24: #{tpu_custom_call.1} parent=1 // pred_region
      _
    $region25: #{tpu_custom_call.1} parent=1 // pred_fallthru
      _
    // Predicated region
    $region26: #{tpu_custom_call.1} parent=1 // pred_check
      _
    $region27: #{tpu_custom_call.1} parent=1 // pred_check_branch
      %44 = sbr.rel (0) target = $region29
    $region28: #{tpu_custom_call.1} parent=1 // pred_region
      _
    $region29: #{tpu_custom_call.1} parent=1 // pred_fallthru
      _
    // Predicated region
    $region30: #{tpu_custom_call.1} parent=1 // pred_check
      _
    $region31: #{tpu_custom_call.1} parent=1 // pred_check_branch
      %46 = sbr.rel (0) target = $region33
    $region32: #{tpu_custom_call.1} parent=1 // pred_region
      %47 = dma.done [#allocation3], 32
    $region33: #{tpu_custom_call.1} parent=1 // pred_fallthru
      _
    // Predicated region
    $region34: #{tpu_custom_call.1} parent=1 // pred_check
      _
    $region35: #{tpu_custom_call.1} parent=1 // pred_check_branch
      %49 = sbr.rel (0) target = $region37
    $region36: #{tpu_custom_call.1} parent=1 // pred_region
      %50 = dma.done [#allocation6], 16
    $region37: #{tpu_custom_call.1} parent=1 // pred_fallthru
      _
    %v52 = vld [vmem:[#allocation2] sm:$0x3]
    %v53 = vpack.c.bf16 %v52, %v52
    %v54 = vld [vmem:[%s1] sm:$0xf]
    %v55 = vld [vmem:[%s1 + $0x4] sm:$0xf]
    %v56 = vld [vmem:[%s2] sm:$0x1]
    %v58 = vlaneseq
    %v59 = vshrl.u32 %v58, 7
    %v60 = vsub.s32 0, %v59
    %v61 = vrot.slane %v56, %v60
    %v65 = vunpack.c.l.b16 %v54
    %v66 = vunpack.c.l.b16 %v55
    %v67 = vpack.c.b16 %v66, %v65
    %vm69 = vcmask 130048
    %v71 = vsel %vm69, %v53, 0
    %73 = vmatprep.subr.bf16.mxu0 0
    %74 = vmatpush1.bf16.msra.mxu0 0
    %75 = vmatprep.subr.bf16.mxu0 0
    %76 = vmatpush1.bf16.msra.mxu0 0
    %77 = vmatprep.subr.bf16.mxu0 0
    %78 = vmatpush1.bf16.msra.mxu0 0
    %79 = vmatprep.subr.bf16.mxu0 0
    %80 = vmatpush1.bf16.msra.mxu0 0
    %81 = vmatprep.subr.bf16.mxu0 0
    %82 = vmatpush1.bf16.msra.mxu0 0
    %83 = vmatprep.subr.bf16.mxu0 0
    %84 = vmatpush1.bf16.msra.mxu0 0
    %85 = vmatprep.subr.bf16.mxu0 0
    %86 = vmatpush1.bf16.msra.mxu0 0
    %87 = vmatprep.subr.bf16.mxu0 0
    %88 = vmatpush1.bf16.msra.mxu0 %v67
    %89 = vmatprep.subr.bf16.mxu0 0
    %90 = vmatpush2.bf16.msra.mxu0 0
    %91 = vmatprep.subr.bf16.mxu0 0
    %92 = vmatpush2.bf16.msra.mxu0 0
    %93 = vmatprep.subr.bf16.mxu0 0
    %94 = vmatpush2.bf16.msra.mxu0 0
    %95 = vmatprep.subr.bf16.mxu0 0
    %96 = vmatpush2.bf16.msra.mxu0 0
    %97 = vmatprep.subr.bf16.mxu0 0
    %98 = vmatpush2.bf16.msra.mxu0 0
    %99 = vmatprep.subr.bf16.mxu0 0
    %100 = vmatpush2.bf16.msra.mxu0 0
    %101 = vmatprep.subr.bf16.mxu0 0
    %102 = vmatpush2.bf16.msra.mxu0 0
    %103 = vmatprep.subr.bf16.mxu0 0
    %104 = vmatpush2.bf16.msra.mxu0 0
    %105 = vmatprep.mubr.bf16.mxu0 0
    %106 = vmatmul.mubr.bf16.gmra.mxu0 %v71
    %v107 = vpop.f32.mrf.mxu0
    %v108 = vadd.f32 %v61, %v107
    %v109 = vpop.f32.mrf.mxu0
    %v110 = vpop.f32.mrf.mxu0
    %v111 = vpop.f32.mrf.mxu0
    %112 = vdwg.mxu0
    %v113 = vmax.f32 %v108, 0.0
    %v114 = vpack.c.bf16 %v113, %v113
    %v115 = vld [vmem:[%s3] sm:$0xf]
    %v116 = vld [vmem:[%s3 + $0x4] sm:$0xf]
    %v117 = vld [vmem:[%s3 + $0x8] sm:$0xf]
    %v118 = vld [vmem:[%s3 + $0xc] sm:$0xf]
    %v119 = vld [vmem:[%s3 + $0x10] sm:$0xf]
    %v120 = vld [vmem:[%s3 + $0x14] sm:$0xf]
    %v121 = vld [vmem:[%s3 + $0x18] sm:$0xf]
    %v122 = vld [vmem:[%s3 + $0x1c] sm:$0xf]
    %v123 = vld [vmem:[%s3 + $0x20] sm:$0xf]
    %v124 = vld [vmem:[%s3 + $0x24] sm:$0xf]
    %v125 = vld [vmem:[%s3 + $0x28] sm:$0xf]
    %v126 = vld [vmem:[%s3 + $0x2c] sm:$0xf]
    %v127 = vld [vmem:[%s3 + $0x30] sm:$0xf]
    %v128 = vld [vmem:[%s3 + $0x34] sm:$0xf]
    %v129 = vld [vmem:[%s3 + $0x38] sm:$0xf]
    %v130 = vld [vmem:[%s3 + $0x3c] sm:$0xf]
    %v131 = vld [vmem:[#allocation5] sm:$0x1]
    %v133 = vlaneseq
    %v134 = vshrl.u32 %v133, 7
    %v135 = vsub.s32 0, %v134
    %v136 = vrot.slane %v131, %v135
    %v154 = vunpack.c.l.b16 %v115
    %v155 = vunpack.c.l.b16 %v116
    %v156 = vunpack.c.l.b16 %v117
    %v157 = vunpack.c.l.b16 %v118
    %v158 = vunpack.c.l.b16 %v119
    %v159 = vunpack.c.l.b16 %v120
    %v160 = vunpack.c.l.b16 %v121
    %v161 = vunpack.c.l.b16 %v122
    %v162 = vunpack.c.l.b16 %v123
    %v163 = vunpack.c.l.b16 %v124
    %v164 = vunpack.c.l.b16 %v125
    %v165 = vunpack.c.l.b16 %v126
    %v166 = vunpack.c.l.b16 %v127
    %v167 = vunpack.c.l.b16 %v128
    %v168 = vunpack.c.l.b16 %v129
    %v169 = vunpack.c.l.b16 %v130
    %v170 = vpack.c.b16 %v155, %v154
    %v171 = vpack.c.b16 %v157, %v156
    %v172 = vpack.c.b16 %v159, %v158
    %v173 = vpack.c.b16 %v161, %v160
    %v174 = vpack.c.b16 %v163, %v162
    %v175 = vpack.c.b16 %v165, %v164
    %v176 = vpack.c.b16 %v167, %v166
    %v177 = vpack.c.b16 %v169, %v168
    %186 = vmatprep.subr.bf16.mxu0 0
    %187 = vmatpush1.bf16.msra.mxu0 %v177
    %188 = vmatprep.subr.bf16.mxu0 0
    %189 = vmatpush1.bf16.msra.mxu0 %v176
    %190 = vmatprep.subr.bf16.mxu0 0
    %191 = vmatpush1.bf16.msra.mxu0 %v175
    %192 = vmatprep.subr.bf16.mxu0 0
    %193 = vmatpush1.bf16.msra.mxu0 %v174
    %194 = vmatprep.subr.bf16.mxu0 0
    %195 = vmatpush1.bf16.msra.mxu0 %v173
    %196 = vmatprep.subr.bf16.mxu0 0
    %197 = vmatpush1.bf16.msra.mxu0 %v172
    %198 = vmatprep.subr.bf16.mxu0 0
    %199 = vmatpush1.bf16.msra.mxu0 %v171
    %200 = vmatprep.subr.bf16.mxu0 0
    %201 = vmatpush1.bf16.msra.mxu0 %v170
    %202 = vmatprep.subr.bf16.mxu0 0
    %203 = vmatpush2.bf16.msra.mxu0 0
    %204 = vmatprep.subr.bf16.mxu0 0
    %205 = vmatpush2.bf16.msra.mxu0 0
    %206 = vmatprep.subr.bf16.mxu0 0
    %207 = vmatpush2.bf16.msra.mxu0 0
    %208 = vmatprep.subr.bf16.mxu0 0
    %209 = vmatpush2.bf16.msra.mxu0 0
    %210 = vmatprep.subr.bf16.mxu0 0
    %211 = vmatpush2.bf16.msra.mxu0 0
    %212 = vmatprep.subr.bf16.mxu0 0
    %213 = vmatpush2.bf16.msra.mxu0 0
    %214 = vmatprep.subr.bf16.mxu0 0
    %215 = vmatpush2.bf16.msra.mxu0 0
    %216 = vmatprep.subr.bf16.mxu0 0
    %217 = vmatpush2.bf16.msra.mxu0 0
    %218 = vmatprep.mubr.bf16.mxu0 0
    %219 = vmatmul.mubr.bf16.gmra.mxu0 %v114
    %v220 = vpop.f32.mrf.mxu0
    %v221 = vadd.f32 %v136, %v220
    %v222 = vpop.f32.mrf.mxu0
    %v223 = vpop.f32.mrf.mxu0
    %v224 = vpop.f32.mrf.mxu0
    %225 = vdwg.mxu0
    %v226 = vmax.f32 %v221, 0.0
    %v227 = vpack.c.bf16 %v226, %v226
    %v228 = vld [vmem:[%s5] sm:$0xf]
    %v229 = vld [vmem:[%s5 + $0x4] sm:$0xf]
    %v230 = vld [vmem:[%s5 + $0x8] sm:$0xf]
    %v231 = vld [vmem:[%s5 + $0xc] sm:$0xf]
    %v232 = vld [vmem:[%s5 + $0x10] sm:$0xf]
    %v233 = vld [vmem:[%s5 + $0x14] sm:$0xf]
    %v234 = vld [vmem:[%s5 + $0x18] sm:$0xf]
    %v235 = vld [vmem:[%s5 + $0x1c] sm:$0xf]
    %v236 = vld [vmem:[%s5 + $0x20] sm:$0xf]
    %v237 = vld [vmem:[%s5 + $0x24] sm:$0xf]
    %v238 = vld [vmem:[%s5 + $0x28] sm:$0xf]
    %v239 = vld [vmem:[%s5 + $0x2c] sm:$0xf]
    %v240 = vld [vmem:[%s5 + $0x30] sm:$0xf]
    %v241 = vld [vmem:[%s5 + $0x34] sm:$0xf]
    %v242 = vld [vmem:[%s5 + $0x38] sm:$0xf]
    %v243 = vld [vmem:[%s5 + $0x3c] sm:$0xf]
    %v244 = vld [vmem:[%s6] sm:$0x1]
    %v246 = vlaneseq
    %v247 = vshrl.u32 %v246, 7
    %v248 = vsub.s32 0, %v247
    %v249 = vrot.slane %v244, %v248
    %v267 = vunpack.c.l.b16 %v228
    %v268 = vunpack.c.l.b16 %v229
    %v269 = vunpack.c.l.b16 %v230
    %v270 = vunpack.c.l.b16 %v231
    %v271 = vunpack.c.l.b16 %v232
    %v272 = vunpack.c.l.b16 %v233
    %v273 = vunpack.c.l.b16 %v234
    %v274 = vunpack.c.l.b16 %v235
    %v275 = vunpack.c.l.b16 %v236
    %v276 = vunpack.c.l.b16 %v237
    %v277 = vunpack.c.l.b16 %v238
    %v278 = vunpack.c.l.b16 %v239
    %v279 = vunpack.c.l.b16 %v240
    %v280 = vunpack.c.l.b16 %v241
    %v281 = vunpack.c.l.b16 %v242
    %v282 = vunpack.c.l.b16 %v243
    %v283 = vpack.c.b16 %v268, %v267
    %v284 = vpack.c.b16 %v270, %v269
    %v285 = vpack.c.b16 %v272, %v271
    %v286 = vpack.c.b16 %v274, %v273
    %v287 = vpack.c.b16 %v276, %v275
    %v288 = vpack.c.b16 %v278, %v277
    %v289 = vpack.c.b16 %v280, %v279
    %v290 = vpack.c.b16 %v282, %v281
    %299 = vmatprep.subr.bf16.mxu0 0
    %300 = vmatpush1.bf16.msra.mxu0 %v290
    %301 = vmatprep.subr.bf16.mxu0 0
    %302 = vmatpush1.bf16.msra.mxu0 %v289
    %303 = vmatprep.subr.bf16.mxu0 0
    %304 = vmatpush1.bf16.msra.mxu0 %v288
    %305 = vmatprep.subr.bf16.mxu0 0
    %306 = vmatpush1.bf16.msra.mxu0 %v287
    %307 = vmatprep.subr.bf16.mxu0 0
    %308 = vmatpush1.bf16.msra.mxu0 %v286
    %309 = vmatprep.subr.bf16.mxu0 0
    %310 = vmatpush1.bf16.msra.mxu0 %v285
    %311 = vmatprep.subr.bf16.mxu0 0
    %312 = vmatpush1.bf16.msra.mxu0 %v284
    %313 = vmatprep.subr.bf16.mxu0 0
    %314 = vmatpush1.bf16.msra.mxu0 %v283
    %315 = vmatprep.subr.bf16.mxu0 0
    %316 = vmatpush2.bf16.msra.mxu0 0
    %317 = vmatprep.subr.bf16.mxu0 0
    %318 = vmatpush2.bf16.msra.mxu0 0
    %319 = vmatprep.subr.bf16.mxu0 0
    %320 = vmatpush2.bf16.msra.mxu0 0
    %321 = vmatprep.subr.bf16.mxu0 0
    %322 = vmatpush2.bf16.msra.mxu0 0
    %323 = vmatprep.subr.bf16.mxu0 0
    %324 = vmatpush2.bf16.msra.mxu0 0
    %325 = vmatprep.subr.bf16.mxu0 0
    %326 = vmatpush2.bf16.msra.mxu0 0
    %327 = vmatprep.subr.bf16.mxu0 0
    %328 = vmatpush2.bf16.msra.mxu0 0
    %329 = vmatprep.subr.bf16.mxu0 0
    %330 = vmatpush2.bf16.msra.mxu0 0
    %331 = vmatprep.mubr.bf16.mxu0 0
    %332 = vmatmul.mubr.bf16.gmra.mxu0 %v227
    %v333 = vpop.f32.mrf.mxu0
    %v334 = vadd.f32 %v249, %v333
    %v335 = vpop.f32.mrf.mxu0
    %v336 = vpop.f32.mrf.mxu0
    %v337 = vpop.f32.mrf.mxu0
    %338 = vdwg.mxu0
    %vm339 = vcmask 58368
    %v340 = vsel %vm339, %v334, -inf
    %v341 = vrot.slane %v340, 4
    %v342 = vmax.f32 %v340, %v341
    %v343 = vrot.slane %v342, 2
    %v344 = vmax.f32 %v342, %v343
    %v345 = vrot.slane %v344, 1
    %v346 = vmax.f32 %v344, %v345
    %v347 = vsub.f32 %v334, %v346
    %v348 = vmul.f32 %v347, 1.442695
    %v349 = vpow.pop %v348
    %v350 = vsel %vm339, %v349, 0.0
    %v351 = vrot.slane %v350, 4
    %v352 = vadd.f32 %v350, %v351
    %v353 = vrot.slane %v352, 2
    %v354 = vadd.f32 %v352, %v353
    %v355 = vrot.slane %v354, 1
    %v356 = vadd.f32 %v354, %v355
    %v357 = vrcp.pop %v356
    %v358 = vmul.f32 %v349, %v357
    %359 = vst.msk [vmem:[#allocation7] sm:$0x3] %vm339, %v358
    // Predicated region
    $region38: #{tpu_custom_call.1} parent=1 // pred_check
      _
    $region39: #{tpu_custom_call.1} parent=1 // pred_check_branch
      %361 = sbr.rel (0) target = $region41
    $region40: #{tpu_custom_call.1} parent=1 // pred_region
      %s363 = ssub.s32 32, 32
      %364 = vsyncadd [#allocation4], %s363
      %s366 = sshll.u32 [#allocation7], 4
      %s367 = int_to_ptr.vmem [resolvable:$true] %s366
      %369 = dma.vmem_to_hbm [thread:$0]  %s367, 32, %s7, [#allocation4]
    $region41: #{tpu_custom_call.1} parent=1 // pred_fallthru
      _
    // Predicated region
    $region42: #{tpu_custom_call.1} parent=1 // pred_check
      _
    $region43: #{tpu_custom_call.1} parent=1 // pred_check_branch
      %371 = sbr.rel (0) target = $region45
    $region44: #{tpu_custom_call.1} parent=1 // pred_region
      %372 = dma.done [#allocation4], 32
    $region45: #{tpu_custom_call.1} parent=1 // pred_fallthru
      _
    %373 = vsyncpa [#allocation3], 1
    %374 = vsyncpa [#allocation6], 1
    %375 = vsyncpa [#allocation4], 1

</llo_original>
